<compile_context>
chip_gen: v7x
topology: tpu7x:2x2x1
jax: 0.10.0
libtpu: 0.0.40
codegen_flags: <defaults>
</compile_context>

<pallas_src>
import jax
import jax.numpy as jnp
from jax.experimental import pallas as pl
from jax.experimental.pallas import tpu as pltpu

_LANE = 128
_NEG_INF = -1e30


def _round_up(x, m):
    return ((x + m - 1) // m) * m


def _vmem_capacity_bytes():
    """Per-TensorCore physical VMEM (conservative fallback if query fails)."""
    try:
        info = pltpu.get_tpu_info()
        for attr in ("vmem_capacity_bytes", "vmem_size_bytes", "vmem_bytes"):
            v = getattr(info, attr, None)
            if v:
                return int(v)
    except Exception:
        pass
    return 64 * 1024 * 1024  # v7x per-TC size: safe lower bound everywhere


# ----------------------------- kernels ---------------------------------------

def _softmax_rows(logits):
    """Numerically stable row softmax; pad lanes carry a -1e30 bias -> exp=0."""
    m = jnp.max(logits, axis=1, keepdims=True)
    e = jnp.exp(logits - m)
    denom = jnp.sum(e, axis=1, keepdims=True)
    # EUP approximate reciprocal + one Newton step (~f32 accuracy, keeps the
    # divide off the VALU slot).
    r = pl.reciprocal(denom, approx=True)
    r = r * (2.0 - denom * r)
    return e * r


def _cls_head_kernel(x_ref, w1_ref, b1_ref, w2_ref, b2_ref, o_ref):
    """Fused dense -> tanh -> out_proj -> softmax; W1/W2 fully VMEM-resident.

    x_ref : [TB, H]   input tile (cast to the MXU dtype in-kernel)
    w1_ref: [H,  H]   dense weight (in, out)        -- resident
    b1_ref: [1,  H]   dense bias (f32)
    w2_ref: [H,  LP]  out_proj weight, lane-padded  -- resident
    b2_ref: [1,  LP]  out_proj bias (f32), pad lanes = -1e30
    o_ref : [TB, LP]  softmax probabilities (pad lanes ~0)
    """
    w1 = w1_ref[...]
    w2 = w2_ref[...]
    x = x_ref[...].astype(w1.dtype)

    h = jnp.dot(x, w1, preferred_element_type=jnp.float32) + b1_ref[...]
    h = jnp.tanh(h)

    logits = jnp.dot(h.astype(w2.dtype), w2,
                     preferred_element_type=jnp.float32) + b2_ref[...]
    o_ref[...] = _softmax_rows(logits).astype(o_ref.dtype)


def _cls_head_ktiled_kernel(x_ref, w1_ref, b1_ref, w2_ref, b2_ref, o_ref,
                            acc_ref):
    """K-tiled variant for hidden sizes whose W1 can't stay fully resident.

    Grid = (batch tiles, H // tk); the first matmul accumulates over the K
    axis into an f32 VMEM scratch, tanh/out_proj/softmax run on the last step.
    """
    k = pl.program_id(1)

    @pl.when(k == 0)
    def _():
        acc_ref[...] = jnp.zeros_like(acc_ref)

    w1 = w1_ref[...]
    x = x_ref[...].astype(w1.dtype)
    acc_ref[...] += jnp.dot(x, w1, preferred_element_type=jnp.float32)

    @pl.when(k == pl.num_programs(1) - 1)
    def _():
        w2 = w2_ref[...]
        h = jnp.tanh(acc_ref[...] + b1_ref[...]).astype(w2.dtype)
        logits = jnp.dot(h, w2, preferred_element_type=jnp.float32) + b2_ref[...]
        o_ref[...] = _softmax_rows(logits).astype(o_ref.dtype)


# --------------------------- pallas_call wrappers -----------------------------

def _run_resident(x, w1, b1, w2, b2, *, B, H, LP, block_b, nb, out_dtype,
                  vmem_limit, single_buffer_weights):
    out_shape = jax.ShapeDtypeStruct((B, LP), out_dtype)

    if nb == 1:
        # Whole problem is one block: no grid at all (no per-step pipeline
        # prologue/epilogue for a degenerate grid=(1,)).
        return pl.pallas_call(
            _cls_head_kernel,
            out_shape=out_shape,
            compiler_params=pltpu.CompilerParams(vmem_limit_bytes=vmem_limit),
        )(x, w1, b1, w2, b2)

    def wspec(shape):
        # Constant-index weights/biases: single buffer frees ~H*H*itemsize of
        # VMEM, which directly buys a larger batch tile.
        if single_buffer_weights:
            return pl.BlockSpec(shape, lambda i: (0, 0),
                                pipeline_mode=pl.Buffered(1))
        return pl.BlockSpec(shape, lambda i: (0, 0))

    return pl.pallas_call(
        _cls_head_kernel,
        out_shape=out_shape,
        grid=(nb,),
        in_specs=[
            pl.BlockSpec((block_b, H), lambda i: (i, 0)),   # streamed
            wspec((H, H)),                                  # resident
            wspec((1, H)),
            wspec((H, LP)),
            wspec((1, LP)),
        ],
        out_specs=pl.BlockSpec((block_b, LP), lambda i: (i, 0)),
        compiler_params=pltpu.CompilerParams(
            # Batch rows are independent -> megacore / v7x 2-TC sharding.
            dimension_semantics=("parallel",),
            vmem_limit_bytes=vmem_limit,
        ),
    )(x, w1, b1, w2, b2)


def _run_ktiled(x, w1, b1, w2, b2, *, B, H, LP, block_b, nb, tk, out_dtype,
                vmem_limit, single_buffer_weights):
    nk = H // tk
    out_shape = jax.ShapeDtypeStruct((B, LP), out_dtype)

    def wspec(shape):
        if single_buffer_weights:
            return pl.BlockSpec(shape, lambda i, k: (0, 0),
                                pipeline_mode=pl.Buffered(1))
        return pl.BlockSpec(shape, lambda i, k: (0, 0))

    return pl.pallas_call(
        _cls_head_ktiled_kernel,
        out_shape=out_shape,
        grid=(nb, nk),
        in_specs=[
            pl.BlockSpec((block_b, tk), lambda i, k: (i, k)),   # streamed x
            pl.BlockSpec((tk, H), lambda i, k: (k, 0)),         # streamed W1 K-slab
            wspec((1, H)),                                      # resident
            wspec((H, LP)),
            wspec((1, LP)),
        ],
        out_specs=pl.BlockSpec((block_b, LP), lambda i, k: (i, 0)),
        scratch_shapes=[pltpu.VMEM((block_b, H), jnp.float32)],
        compiler_params=pltpu.CompilerParams(
            dimension_semantics=("parallel", "arbitrary"),
            vmem_limit_bytes=vmem_limit,
        ),
    )(x, w1, b1, w2, b2)


# ------------------------------- public API -----------------------------------

def prepare_classification_head_params(w_dense, b_dense, w_out, b_out, *,
                                        mxu_dtype=jnp.bfloat16):
    """One-time (model-load) weight preparation, hoisted out of the per-call path.

    * w_dense [H, H], w_out [H, L] are stored [in, out] (nn.Linear transposed).
    * biases may be 1-D [out] or [1, out] (nn.Linear style 1-D is accepted).
    * out_proj weight/bias are lane-padded to LP = round_up(L, 128); pad bias
      is -1e30 (kept f32) so the pad lanes vanish under softmax.
    * weights are cast once to the MXU operand dtype (bf16 default on ALL
      generations — v5e's MXU is bf16-native too); biases stay f32.
    """
    H, H2 = w_dense.shape
    assert H == H2, "dense weight must be square [hidden, hidden]"
    L = w_out.shape[1]
    LP = _round_up(max(L, _LANE), _LANE)

    b1 = jnp.asarray(b_dense, dtype=jnp.float32).reshape(1, H)
    b2 = jnp.asarray(b_out, dtype=jnp.float32).reshape(1, L)

    w2p = jnp.pad(jnp.asarray(w_out), ((0, 0), (0, LP - L)))
    b2p = jnp.pad(b2, ((0, 0), (0, LP - L)), constant_values=_NEG_INF)

    return dict(
        w1=jnp.asarray(w_dense, dtype=mxu_dtype),
        b1=b1,
        w2=w2p.astype(mxu_dtype),
        b2=b2p,
        hidden=H,
        num_labels=L,
        padded_labels=LP,
    )


def classification_head(features, params, *, block_b=None, k_tile=None,
                        out_dtype=jnp.float32, force_k_tiled=False):
    """features: [B, H]; params from prepare_classification_head_params().
    Returns [B, num_labels] softmax probabilities (eval-mode forward)."""
    B, H = features.shape
    assert H == params["hidden"], "feature dim must match dense weight"
    w1, b1, w2, b2 = params["w1"], params["b1"], params["w2"], params["b2"]
    L, LP = params["num_labels"], params["padded_labels"]

    w_item = jnp.dtype(w1.dtype).itemsize
    x_item = jnp.dtype(features.dtype).itemsize
    o_item = jnp.dtype(out_dtype).itemsize

    # ---- generation-aware VMEM budget (per TensorCore) ----------------------
    # ~3/4 of physical: ≈96 MiB on v5e/v6e (128 MiB), ≈48 MiB on v7x (64 MiB).
    # Passed as vmem_limit_bytes so it's above the 16/32 MiB default scoped
    # limits.  On v7x, "parallel" batch sharding duplicates the resident
    # weights per TC — this per-TC budget already accounts for that.
    physical = _vmem_capacity_bytes()
    budget = max(16 << 20, (physical * 3) // 4)
    vmem_limit = int(budget)

    resident = (H * H + H * LP) * w_item + (H + LP) * 4  # single-buffered weights
    use_k_tiled = force_k_tiled or (resident + (4 << 20) > budget)
    if H % _LANE != 0:
        use_k_tiled = False  # K-tiling needs a lane-aligned hidden dim

    if use_k_tiled:
        if k_tile is None:
            tk = 512
            while tk > _LANE and H % tk != 0:
                tk -= _LANE
        else:
            tk = int(k_tile)
        assert tk % _LANE == 0 and H % tk == 0, \
            "k_tile must be a multiple of 128 that divides hidden"
        resident_eff = (2 * tk * H + H * LP) * w_item + (H + LP) * 4
        per_row = (2 * tk * x_item          # double-buffered x K-blocks
                   + 2 * LP * o_item        # double-buffered output block
                   + H * 4                  # f32 accumulator scratch
                   + (H + 2 * LP) * 4)      # h / logits temporaries
    else:
        tk = H
        resident_eff = resident
        per_row = 2 * H * x_item + 2 * LP * o_item + (H + 2 * LP) * 4

    # ---- batch tile: multiple of the sublane packing of the narrowest dtype -
    min_item = min(x_item, o_item, w_item)
    align = 8 * max(1, 4 // min_item)       # f32 -> 8, bf16 -> 16, int8/fp8 -> 32
    if block_b is None:
        avail = budget - resident_eff - (2 << 20)
        block_b = max(align, avail // per_row) if avail > 0 else align
    block_b = max(align, (int(block_b) // align) * align)
    block_b = min(block_b, 512)             # >=2 grid steps keeps both v7x TCs busy
    block_b = min(block_b, _round_up(B, align))

    # No batch padding copy: ragged last block is handled by Pallas (rows are
    # independent; out-of-range rows are never observed in the sliced output).
    nb = pl.cdiv(B, block_b)

    def run(single_buffer_weights):
        kwargs = dict(B=B, H=H, LP=LP, block_b=block_b, nb=nb,
                      out_dtype=out_dtype, vmem_limit=vmem_limit,
                      single_buffer_weights=single_buffer_weights)
        if use_k_tiled:
            return _run_ktiled(features, w1, b1, w2, b2, tk=tk, **kwargs)
        return _run_resident(features, w1, b1, w2, b2, **kwargs)

    try:
        out = run(True)
    except Exception:
        # pl.Buffered(1) (single-buffered resident weights) not supported on
        # this JAX/Mosaic version -> fall back to default double-buffering.
        out = run(False)

    return out[:, :L]


# ------------------------------- reference ------------------------------------

def reference(features, w_dense, b_dense, w_out, b_out, *,
              mxu_dtype=jnp.bfloat16):
    x = features.astype(mxu_dtype)
    w1 = jnp.asarray(w_dense, dtype=mxu_dtype)
    w2 = jnp.asarray(w_out, dtype=mxu_dtype)
    b1 = jnp.asarray(b_dense, jnp.float32).reshape(1, -1)
    b2 = jnp.asarray(b_out, jnp.float32).reshape(1, -1)
    h = jnp.tanh(jnp.dot(x, w1, preferred_element_type=jnp.float32) + b1)
    logits = jnp.dot(h.astype(mxu_dtype), w2,
                     preferred_element_type=jnp.float32) + b2
    return jax.nn.softmax(logits, axis=1)


if __name__ == "__main__":
    key = jax.random.PRNGKey(0)
    k_x, k_w1, k_b1, k_w2, k_b2, k_x2, k_w3, k_b3, k_w4, k_b4, k_x3 = \
        jax.random.split(key, 11)

    # TODO(synk): dropout is a no-op in eval mode (softmax branch implies eval);
    # training-mode dropout masks are not implemented here.

    # --- Case 1: small head, hidden=32, labels=4 ------------------------------
    B, H, L = 16, 32, 4
    features = jax.random.normal(k_x, (B, H), jnp.float32)
    w_dense = jax.random.normal(k_w1, (H, H), jnp.float32) / jnp.sqrt(H)
    b_dense = jax.random.normal(k_b1, (H,), jnp.float32) * 0.01
    w_out = jax.random.normal(k_w2, (H, L), jnp.float32) / jnp.sqrt(H)
    b_out = jax.random.normal(k_b2, (L,), jnp.float32) * 0.01

    # 1a) exact f32 check on the single-block (no-grid) path.
    p_f32 = prepare_classification_head_params(w_dense, b_dense, w_out, b_out,
                                               mxu_dtype=jnp.float32)
    out = jax.block_until_ready(classification_head(features, p_f32))
    ref = reference(features, w_dense, b_dense, w_out, b_out,
                    mxu_dtype=jnp.float32)
    assert out.shape == (B, L)
    assert jnp.allclose(out, ref, atol=1e-5, rtol=1e-5), "f32 path mismatch"
    assert jnp.allclose(jnp.sum(out, axis=1), 1.0, atol=1e-5), "rows must sum to 1"

    # 1b) default bf16 MXU operands, batch-tiled grid with a ragged last block
    #     (B=20, block_b=16 -> grid=(2,), no batch padding copy).
    B2 = 20
    features2 = jax.random.normal(k_x2, (B2, H), jnp.float32)
    p_bf16 = prepare_classification_head_params(w_dense, b_dense, w_out, b_out)
    out2 = jax.block_until_ready(
        classification_head(features2, p_bf16, block_b=16))
    ref2 = reference(features2, w_dense, b_dense, w_out, b_out)
    assert out2.shape == (B2, L)
    assert jnp.allclose(out2, ref2, atol=5e-3, rtol=5e-3), "bf16 grid path mismatch"
    assert jnp.allclose(jnp.sum(out2, axis=1), 1.0, atol=1e-3), "rows must sum to 1"

    # --- Case 2: K-tiled fallback path (hidden=256, forced) -------------------
    B3, H3, L3 = 40, 256, 3
    features3 = jax.random.normal(k_x3, (B3, H3), jnp.float32)
    w_dense3 = jax.random.normal(k_w3, (H3, H3), jnp.float32) / jnp.sqrt(H3)
    b_dense3 = jax.random.normal(k_b3, (H3,), jnp.float32) * 0.01
    w_out3 = jax.random.normal(k_w4, (H3, L3), jnp.float32) / jnp.sqrt(H3)
    b_out3 = jax.random.normal(k_b4, (L3,), jnp.float32) * 0.01

    p3 = prepare_classification_head_params(w_dense3, b_dense3, w_out3, b_out3)
    out3 = jax.block_until_ready(
        classification_head(features3, p3, block_b=16, k_tile=128,
                            force_k_tiled=True))
    ref3 = reference(features3, w_dense3, b_dense3, w_out3, b_out3)
    assert out3.shape == (B3, L3)
    assert jnp.allclose(out3, ref3, atol=5e-3, rtol=5e-3), "K-tiled path mismatch"
    assert jnp.allclose(jnp.sum(out3, axis=1), 1.0, atol=1e-3), "rows must sum to 1"

    print("KERNEL_OK")
</pallas_src>

<mosaic_0001>
module attributes {stable_mosaic.version = 11 : i64} {
  func.func @_cls_head_kernel(%arg0: memref<16x32xf32, #tpu.memory_space<vmem>>, %arg1: memref<32x32xf32, #tpu.memory_space<vmem>>, %arg2: memref<1x32xf32, #tpu.memory_space<vmem>>, %arg3: memref<32x128xf32, #tpu.memory_space<vmem>>, %arg4: memref<1x128xf32, #tpu.memory_space<vmem>>, %arg5: memref<16x128xf32, #tpu.memory_space<vmem>>) attributes {dimension_semantics = [], scalar_prefetch = 0 : i64, scratch_operands = 0 : i64, tpu.core_type = #tpu.core_type<tc>} {
    %c0 = arith.constant 0 : index
    %c0_0 = arith.constant 0 : index
    %0 = vector.load %arg1[%c0, %c0_0] : memref<32x32xf32, #tpu.memory_space<vmem>>, vector<32x32xf32>
    %c0_1 = arith.constant 0 : index
    %c0_2 = arith.constant 0 : index
    %1 = vector.load %arg3[%c0_1, %c0_2] : memref<32x128xf32, #tpu.memory_space<vmem>>, vector<32x128xf32>
    %c0_3 = arith.constant 0 : index
    %c0_4 = arith.constant 0 : index
    %2 = vector.load %arg0[%c0_3, %c0_4] : memref<16x32xf32, #tpu.memory_space<vmem>>, vector<16x32xf32>
    %cst = arith.constant dense<0.000000e+00> : vector<16x32xf32>
    %3 = tpu.matmul %2, %0, %cst {dimension_numbers = #tpu.dot_dimension_numbers<[1], [0], [0], [1], [0, 0, 1, 1], [], []>} : vector<16x32xf32>, vector<32x32xf32>, vector<16x32xf32> -> vector<16x32xf32>
    %c0_5 = arith.constant 0 : index
    %c0_6 = arith.constant 0 : index
    %4 = vector.load %arg2[%c0_5, %c0_6] : memref<1x32xf32, #tpu.memory_space<vmem>>, vector<1x32xf32>
    %5 = vector.broadcast %4 : vector<1x32xf32> to vector<16x32xf32>
    %6 = arith.addf %3, %5 : vector<16x32xf32>
    %7 = math.tanh %6 : vector<16x32xf32>
    %cst_7 = arith.constant dense<0.000000e+00> : vector<16x128xf32>
    %8 = tpu.matmul %7, %1, %cst_7 {dimension_numbers = #tpu.dot_dimension_numbers<[1], [0], [0], [1], [0, 0, 1, 1], [], []>} : vector<16x32xf32>, vector<32x128xf32>, vector<16x128xf32> -> vector<16x128xf32>
    %c0_8 = arith.constant 0 : index
    %c0_9 = arith.constant 0 : index
    %9 = vector.load %arg4[%c0_8, %c0_9] : memref<1x128xf32, #tpu.memory_space<vmem>>, vector<1x128xf32>
    %10 = vector.broadcast %9 : vector<1x128xf32> to vector<16x128xf32>
    %11 = arith.addf %8, %10 : vector<16x128xf32>
    %cst_10 = arith.constant dense<0xFF800000> : vector<16xf32>
    %12 = vector.multi_reduction <maximumf>, %11, %cst_10 [1] : vector<16x128xf32> to vector<16xf32>
    %13 = vector.shape_cast %12 : vector<16xf32> to vector<16x1xf32>
    %14 = vector.broadcast %13 : vector<16x1xf32> to vector<16x128xf32>
    %15 = arith.subf %11, %14 : vector<16x128xf32>
    %16 = math.exp %15 : vector<16x128xf32>
    %cst_11 = arith.constant dense<0.000000e+00> : vector<16xf32>
    %17 = vector.multi_reduction <add>, %16, %cst_11 [1] : vector<16x128xf32> to vector<16xf32>
    %18 = vector.shape_cast %17 : vector<16xf32> to vector<16x1xf32>
    %19 = tpu.reciprocal %18 {approx = true} : vector<16x1xf32> -> vector<16x1xf32>
    %20 = arith.mulf %18, %19 : vector<16x1xf32>
    %cst_12 = arith.constant 2.000000e+00 : f32
    %21 = vector.broadcast %cst_12 : f32 to vector<16x1xf32>
    %22 = arith.subf %21, %20 : vector<16x1xf32>
    %23 = arith.mulf %19, %22 : vector<16x1xf32>
    %24 = vector.broadcast %23 : vector<16x1xf32> to vector<16x128xf32>
    %25 = arith.mulf %16, %24 : vector<16x128xf32>
    %c0_13 = arith.constant 0 : index
    %c0_14 = arith.constant 0 : index
    %26 = vector.load %arg5[%c0_13, %c0_14] : memref<16x128xf32, #tpu.memory_space<vmem>>, vector<16x128xf32>
    tpu.vector_store %arg5[%c0_13, %c0_14], %25 {strides = array<i32>} : memref<16x128xf32, #tpu.memory_space<vmem>>, vector<16x128xf32>,
    return
  }
}

module attributes {stable_mosaic.version = 11 : i64} {
  func.func @_cls_head_kernel(%arg0: memref<16x32xf32, #tpu.memory_space<vmem>>, %arg1: memref<32x32xf32, #tpu.memory_space<vmem>>, %arg2: memref<1x32xf32, #tpu.memory_space<vmem>>, %arg3: memref<32x128xf32, #tpu.memory_space<vmem>>, %arg4: memref<1x128xf32, #tpu.memory_space<vmem>>, %arg5: memref<16x128xf32, #tpu.memory_space<vmem>>) attributes {dimension_semantics = [], scalar_prefetch = 0 : i64, scratch_operands = 0 : i64, tpu.core_type = #tpu.core_type<tc>} {
    %c0 = arith.constant 0 : index
    %c0_0 = arith.constant 0 : index
    %0 = vector.load %arg1[%c0, %c0_0] : memref<32x32xf32, #tpu.memory_space<vmem>>, vector<32x32xf32>
    %c0_1 = arith.constant 0 : index
    %c0_2 = arith.constant 0 : index
    %1 = vector.load %arg3[%c0_1, %c0_2] : memref<32x128xf32, #tpu.memory_space<vmem>>, vector<32x128xf32>
    %c0_3 = arith.constant 0 : index
    %c0_4 = arith.constant 0 : index
    %2 = vector.load %arg0[%c0_3, %c0_4] : memref<16x32xf32, #tpu.memory_space<vmem>>, vector<16x32xf32>
    %cst = arith.constant dense<0.000000e+00> : vector<16x32xf32>
    %3 = tpu.matmul %2, %0, %cst {dimension_numbers = #tpu.dot_dimension_numbers<[1], [0], [0], [1], [0, 0, 1, 1], [], []>} : vector<16x32xf32>, vector<32x32xf32>, vector<16x32xf32> -> vector<16x32xf32>
    %c0_5 = arith.constant 0 : index
    %c0_6 = arith.constant 0 : index
    %4 = vector.load %arg2[%c0_5, %c0_6] : memref<1x32xf32, #tpu.memory_space<vmem>>, vector<1x32xf32>
    %5 = vector.broadcast %4 : vector<1x32xf32> to vector<16x32xf32>
    %6 = arith.addf %3, %5 : vector<16x32xf32>
    %7 = math.tanh %6 : vector<16x32xf32>
    %cst_7 = arith.constant dense<0.000000e+00> : vector<16x128xf32>
    %8 = tpu.matmul %7, %1, %cst_7 {dimension_numbers = #tpu.dot_dimension_numbers<[1], [0], [0], [1], [0, 0, 1, 1], [], []>} : vector<16x32xf32>, vector<32x128xf32>, vector<16x128xf32> -> vector<16x128xf32>
    %c0_8 = arith.constant 0 : index
    %c0_9 = arith.constant 0 : index
    %9 = vector.load %arg4[%c0_8, %c0_9] : memref<1x128xf32, #tpu.memory_space<vmem>>, vector<1x128xf32>
    %10 = vector.broadcast %9 : vector<1x128xf32> to vector<16x128xf32>
    %11 = arith.addf %8, %10 : vector<16x128xf32>
    %cst_10 = arith.constant dense<0xFF800000> : vector<16xf32>
    %12 = vector.multi_reduction <maximumf>, %11, %cst_10 [1] : vector<16x128xf32> to vector<16xf32>
    %13 = vector.shape_cast %12 : vector<16xf32> to vector<16x1xf32>
    %14 = vector.broadcast %13 : vector<16x1xf32> to vector<16x128xf32>
    %15 = arith.subf %11, %14 : vector<16x128xf32>
    %16 = math.exp %15 : vector<16x128xf32>
    %cst_11 = arith.constant dense<0.000000e+00> : vector<16xf32>
    %17 = vector.multi_reduction <add>, %16, %cst_11 [1] : vector<16x128xf32> to vector<16xf32>
    %18 = vector.shape_cast %17 : vector<16xf32> to vector<16x1xf32>
    %19 = tpu.reciprocal %18 {approx = true} : vector<16x1xf32> -> vector<16x1xf32>
    %20 = arith.mulf %18, %19 : vector<16x1xf32>
    %cst_12 = arith.constant 2.000000e+00 : f32
    %21 = vector.broadcast %cst_12 : f32 to vector<16x1xf32>
    %22 = arith.subf %21, %20 : vector<16x1xf32>
    %23 = arith.mulf %19, %22 : vector<16x1xf32>
    %24 = vector.broadcast %23 : vector<16x1xf32> to vector<16x128xf32>
    %25 = arith.mulf %16, %24 : vector<16x128xf32>
    %c0_13 = arith.constant 0 : index
    %c0_14 = arith.constant 0 : index
    %26 = vector.load %arg5[%c0_13, %c0_14] : memref<16x128xf32, #tpu.memory_space<vmem>>, vector<16x128xf32>
    tpu.vector_store %arg5[%c0_13, %c0_14], %25 {strides = array<i32>} : memref<16x128xf32, #tpu.memory_space<vmem>>, vector<16x128xf32>,
    return
  }
}

</mosaic_0001>

<llo_original>
// kernel: tpu_custom_call.1
$region0: #{tpu_custom_call.1}
  #allocation0 [shape = 'u32[]', space=smem, size = 0x4, offset = 0x4, fixed_abs, tag = 'smem constant byte address 0x4 - core index']
  #allocation1 [shape = 'u32[144,128]{1,0:T(1,128)}', space=vmem, size = 0x12000, scoped, tag = 'internal scratch']
  %s0 = inlined_call_operand.hbm [shape: f32[16,32], index: 0, kind: input, shape index: {}]
  %s1 = inlined_call_operand.hbm [shape: f32[32,32], index: 1, kind: input, shape index: {}]
  %s2 = inlined_call_operand.vmem [shape: f32[1,32], index: 2, kind: input, shape index: {}]
  %s3 = inlined_call_operand.hbm [shape: f32[32,128], index: 3, kind: input, shape index: {}]
  %s4 = inlined_call_operand.vmem [shape: f32[1,128], index: 4, kind: input, shape index: {}]
  %s5 = inlined_call_operand.hbm [shape: f32[16,128], index: 5, kind: output, shape index: {}]
  %s6 = sld [smem:[#allocation0]]
  $region42: #{tpu_custom_call.1} parent=0
    _
  %s8 = ssub.s32 1, %s6
  %s9 = scalar_select 0, %s8, %s6
  $region1: #{tpu_custom_call.1} parent=0
    #allocation2 [shape = 'u8[8192]{0}', space=vmem, size = 0x2000, scoped, tag = 'input window, operand 0, single buffered']
    #allocation3 [shape = 's32[1]{0}', space=sflag, size = 0x4, scoped, tag = 'scoped memory for tpu_custom_call.1']
    #allocation4 [shape = 's32[1]{0}', space=sflag, size = 0x4, scoped, tag = 'scoped memory for tpu_custom_call.1']
    #allocation5 [shape = 'u8[16384]{0}', space=vmem, size = 0x4000, scoped, tag = 'input window, operand 1, single buffered']
    #allocation6 [shape = 's32[1]{0}', space=sflag, size = 0x4, scoped, tag = 'scoped memory for tpu_custom_call.1']
    #allocation7 [shape = 'u8[16384]{0}', space=vmem, size = 0x4000, scoped, tag = 'input window, operand 3, single buffered']
    #allocation8 [shape = 'u8[8192]{0}', space=vmem, size = 0x2000, scoped, tag = 'output window, operand 0, single buffered']
    %10 = vsyncpa [#allocation3], 0
    %11 = vsyncpa [#allocation6], 0
    %12 = vsyncpa [#allocation4], 0
    // Predicated region
    $region2: #{tpu_custom_call.1} parent=1 // pred_check
      _
    $region3: #{tpu_custom_call.1} parent=1 // pred_check_branch
      %14 = sbr.rel (0) target = $region5
    $region4: #{tpu_custom_call.1} parent=1 // pred_region
      %s16 = ssub.s32 256, 256
      %17 = vsyncadd [#allocation3], %s16
      %s18 = sshll.u32 [#allocation2], 4
      %s19 = int_to_ptr.vmem [resolvable:$true] %s18
      %24 = dma.hbm_to_vmem [thread:$0]  %s0, 256, %s19, [#allocation3], 128, 128, 8
    $region5: #{tpu_custom_call.1} parent=1 // pred_fallthru
      _
    // Predicated region
    $region6: #{tpu_custom_call.1} parent=1 // pred_check
      _
    $region7: #{tpu_custom_call.1} parent=1 // pred_check_branch
      %26 = sbr.rel (0) target = $region9
    $region8: #{tpu_custom_call.1} parent=1 // pred_region
      %s28 = ssub.s32 512, 512
      %29 = vsyncadd [#allocation6], %s28
      %s30 = sshll.u32 [#allocation5], 4
      %s31 = int_to_ptr.vmem [resolvable:$true] %s30
      %36 = dma.hbm_to_vmem [thread:$0]  %s1, 512, %s31, [#allocation6], 128, 128, 8
    $region9: #{tpu_custom_call.1} parent=1 // pred_fallthru
      _
    // Predicated region
    $region10: #{tpu_custom_call.1} parent=1 // pred_check
      _
    $region11: #{tpu_custom_call.1} parent=1 // pred_check_branch
      %38 = sbr.rel (0) target = $region13
    $region12: #{tpu_custom_call.1} parent=1 // pred_region
      _
    $region13: #{tpu_custom_call.1} parent=1 // pred_fallthru
      _
    // Predicated region
    $region14: #{tpu_custom_call.1} parent=1 // pred_check
      _
    $region15: #{tpu_custom_call.1} parent=1 // pred_check_branch
      %40 = sbr.rel (0) target = $region17
    $region16: #{tpu_custom_call.1} parent=1 // pred_region
      %s42 = ssub.s32 512, 512
      %43 = vsyncadd [#allocation6], %s42
      %s44 = sshll.u32 [#allocation7], 4
      %s45 = int_to_ptr.vmem [resolvable:$true] %s44
      %50 = dma.hbm_to_vmem [thread:$0]  %s3, 512, %s45, [#allocation6], 128, 128, 8
    $region17: #{tpu_custom_call.1} parent=1 // pred_fallthru
      _
    // Predicated region
    $region18: #{tpu_custom_call.1} parent=1 // pred_check
      _
    $region19: #{tpu_custom_call.1} parent=1 // pred_check_branch
      %52 = sbr.rel (0) target = $region21
    $region20: #{tpu_custom_call.1} parent=1 // pred_region
      _
    $region21: #{tpu_custom_call.1} parent=1 // pred_fallthru
      _
    // Predicated region
    $region22: #{tpu_custom_call.1} parent=1 // pred_check
      _
    $region23: #{tpu_custom_call.1} parent=1 // pred_check_branch
      %54 = sbr.rel (0) target = $region25
    $region24: #{tpu_custom_call.1} parent=1 // pred_region
      %55 = dma.done [#allocation3], 256
    $region25: #{tpu_custom_call.1} parent=1 // pred_fallthru
      _
    // Predicated region
    $region26: #{tpu_custom_call.1} parent=1 // pred_check
      _
    $region27: #{tpu_custom_call.1} parent=1 // pred_check_branch
      %57 = sbr.rel (0) target = $region29
    $region28: #{tpu_custom_call.1} parent=1 // pred_region
      %58 = dma.done [#allocation6], 512
    $region29: #{tpu_custom_call.1} parent=1 // pred_fallthru
      _
    // Predicated region
    $region30: #{tpu_custom_call.1} parent=1 // pred_check
      _
    $region31: #{tpu_custom_call.1} parent=1 // pred_check_branch
      %60 = sbr.rel (0) target = $region33
    $region32: #{tpu_custom_call.1} parent=1 // pred_region
      %61 = dma.done [#allocation6], 512
    $region33: #{tpu_custom_call.1} parent=1 // pred_fallthru
      _
    %v62 = vld [vmem:[#allocation5] sm:$0xff]
    %v63 = vld [vmem:[#allocation5 + $0x8] sm:$0xff]
    %v64 = vld [vmem:[#allocation5 + $0x10] sm:$0xff]
    %v65 = vld [vmem:[#allocation5 + $0x18] sm:$0xff]
    %v66 = vld [vmem:[#allocation7] sm:$0xff]
    %v67 = vld [vmem:[#allocation7 + $0x8] sm:$0xff]
    %v68 = vld [vmem:[#allocation7 + $0x10] sm:$0xff]
    %v69 = vld [vmem:[#allocation7 + $0x18] sm:$0xff]
    %v70 = vld [vmem:[#allocation2] sm:$0xff]
    %v71 = vld [vmem:[#allocation2 + $0x8] sm:$0xff]
    %v72 = vld [vmem:[%s2] sm:$0x1]
    %v74 = vlaneseq
    %v75 = vshrl.u32 %v74, 7
    %v76 = vsub.s32 0, %v75
    %v77 = vrot.slane %v72, %v76
    %vm79 = vcmask 261120
    %v81 = vsel %vm79, %v70, 0
    %v84 = vsel %vm79, %v71, 0
    %86 = vmatprep.subr.mxu0 0.0
    %87 = vmatpush1.msra.mxu0 %v62
    %88 = vmatprep.subr.mxu0 0.0
    %89 = vmatpush1.msra.mxu0 %v63
    %90 = vmatprep.subr.mxu0 0.0
    %91 = vmatpush1.msra.mxu0 %v64
    %92 = vmatprep.subr.mxu0 0.0
    %93 = vmatpush1.msra.mxu0 %v65
    %94 = vmatprep.subr.mxu0 0.0
    %95 = vmatpush1.msra.mxu0 0.0
    %96 = vmatprep.subr.mxu0 0.0
    %97 = vmatpush1.msra.mxu0 0.0
    %98 = vmatprep.subr.mxu0 0.0
    %99 = vmatpush1.msra.mxu0 0.0
    %100 = vmatprep.subr.mxu0 0.0
    %101 = vmatpush1.msra.mxu0 0.0
    %102 = vmatprep.subr.mxu0 0.0
    %103 = vmatpush1.msra.mxu0 0.0
    %104 = vmatprep.subr.mxu0 0.0
    %105 = vmatpush1.msra.mxu0 0.0
    %106 = vmatprep.subr.mxu0 0.0
    %107 = vmatpush1.msra.mxu0 0.0
    %108 = vmatprep.subr.mxu0 0.0
    %109 = vmatpush1.msra.mxu0 0.0
    %110 = vmatprep.subr.mxu0 0.0
    %111 = vmatpush1.msra.mxu0 0.0
    %112 = vmatprep.subr.mxu0 0.0
    %113 = vmatpush1.msra.mxu0 0.0
    %114 = vmatprep.subr.mxu0 0.0
    %115 = vmatpush1.msra.mxu0 0.0
    %116 = vmatprep.subr.mxu0 0.0
    %117 = vmatpush1.msra.mxu0 0.0
    %118 = vmatprep.subr.mxu0 0.0
    %119 = vmatpush1.msra.mxu0 0.0
    %120 = vmatprep.subr.mxu0 0.0
    %121 = vmatpush1.msra.mxu0 0.0
    %122 = vmatprep.subr.mxu0 0.0
    %123 = vmatpush1.msra.mxu0 0.0
    %124 = vmatprep.subr.mxu0 0.0
    %125 = vmatpush1.msra.mxu0 0.0
    %126 = vmatprep.subr.mxu0 0.0
    %127 = vmatpush1.msra.mxu0 0.0
    %128 = vmatprep.subr.mxu0 0.0
    %129 = vmatpush1.msra.mxu0 0.0
    %130 = vmatprep.subr.mxu0 0.0
    %131 = vmatpush1.msra.mxu0 0.0
    %132 = vmatprep.subr.mxu0 0.0
    %133 = vmatpush1.msra.mxu0 0.0
    %134 = vmatprep.subr.mxu0 0.0
    %135 = vmatpush1.msra.mxu0 0.0
    %136 = vmatprep.subr.mxu0 0.0
    %137 = vmatpush1.msra.mxu0 0.0
    %138 = vmatprep.subr.mxu0 0.0
    %139 = vmatpush1.msra.mxu0 0.0
    %140 = vmatprep.subr.mxu0 0.0
    %141 = vmatpush1.msra.mxu0 0.0
    %142 = vmatprep.subr.mxu0 0.0
    %143 = vmatpush1.msra.mxu0 0.0
    %144 = vmatprep.subr.mxu0 0.0
    %145 = vmatpush1.msra.mxu0 0.0
    %146 = vmatprep.subr.mxu0 0.0
    %147 = vmatpush1.msra.mxu0 0.0
    %148 = vmatprep.subr.mxu0 0.0
    %149 = vmatpush1.msra.mxu0 0.0
    %150 = vmatprep.mubr.f32.mxu0 0.0
    %151 = vmatmul.mubr.f32.gmra.mrb[0].mxu0 %v81
    %v152 = vpop.f32.mrb[0].mxu0
    %v153 = vadd.f32 %v77, %v152
    %v154 = vpop.f32.mrb[0].mxu0
    %155 = vmatprep.mubr.f32.mxu0 0.0
    %156 = vmatmul.mubr.f32.gmra.mrb[0].mxu0 %v84
    %v157 = vpop.f32.mrb[0].mxu0
    %v158 = vadd.f32 %v77, %v157
    %v159 = vpop.f32.mrb[0].mxu0
    %160 = vdwg.mxu0
    %v161 = vtanh.pop %v153
    %v162 = vtanh.pop %v158
    %v163 = vld [vmem:[%s4] sm:$0x1]
    %v165 = vlaneseq
    %v166 = vshrl.u32 %v165, 7
    %v167 = vsub.s32 0, %v166
    %v168 = vrot.slane %v163, %v167
    %v171 = vsel %vm79, %v161, 0
    %v174 = vsel %vm79, %v162, 0
    %176 = vmatprep.subr.mxu0 0.0
    %177 = vmatpush1.msra.mxu0 %v66
    %178 = vmatprep.subr.mxu0 0.0
    %179 = vmatpush1.msra.mxu0 %v67
    %180 = vmatprep.subr.mxu0 0.0
    %181 = vmatpush1.msra.mxu0 %v68
    %182 = vmatprep.subr.mxu0 0.0
    %183 = vmatpush1.msra.mxu0 %v69
    %184 = vmatprep.subr.mxu0 0.0
    %185 = vmatpush1.msra.mxu0 0.0
    %186 = vmatprep.subr.mxu0 0.0
    %187 = vmatpush1.msra.mxu0 0.0
    %188 = vmatprep.subr.mxu0 0.0
    %189 = vmatpush1.msra.mxu0 0.0
    %190 = vmatprep.subr.mxu0 0.0
    %191 = vmatpush1.msra.mxu0 0.0
    %192 = vmatprep.subr.mxu0 0.0
    %193 = vmatpush1.msra.mxu0 0.0
    %194 = vmatprep.subr.mxu0 0.0
    %195 = vmatpush1.msra.mxu0 0.0
    %196 = vmatprep.subr.mxu0 0.0
    %197 = vmatpush1.msra.mxu0 0.0
    %198 = vmatprep.subr.mxu0 0.0
    %199 = vmatpush1.msra.mxu0 0.0
    %200 = vmatprep.subr.mxu0 0.0
    %201 = vmatpush1.msra.mxu0 0.0
    %202 = vmatprep.subr.mxu0 0.0
    %203 = vmatpush1.msra.mxu0 0.0
    %204 = vmatprep.subr.mxu0 0.0
    %205 = vmatpush1.msra.mxu0 0.0
    %206 = vmatprep.subr.mxu0 0.0
    %207 = vmatpush1.msra.mxu0 0.0
    %208 = vmatprep.subr.mxu0 0.0
    %209 = vmatpush1.msra.mxu0 0.0
    %210 = vmatprep.subr.mxu0 0.0
    %211 = vmatpush1.msra.mxu0 0.0
    %212 = vmatprep.subr.mxu0 0.0
    %213 = vmatpush1.msra.mxu0 0.0
    %214 = vmatprep.subr.mxu0 0.0
    %215 = vmatpush1.msra.mxu0 0.0
    %216 = vmatprep.subr.mxu0 0.0
    %217 = vmatpush1.msra.mxu0 0.0
    %218 = vmatprep.subr.mxu0 0.0
    %219 = vmatpush1.msra.mxu0 0.0
    %220 = vmatprep.subr.mxu0 0.0
    %221 = vmatpush1.msra.mxu0 0.0
    %222 = vmatprep.subr.mxu0 0.0
    %223 = vmatpush1.msra.mxu0 0.0
    %224 = vmatprep.subr.mxu0 0.0
    %225 = vmatpush1.msra.mxu0 0.0
    %226 = vmatprep.subr.mxu0 0.0
    %227 = vmatpush1.msra.mxu0 0.0
    %228 = vmatprep.subr.mxu0 0.0
    %229 = vmatpush1.msra.mxu0 0.0
    %230 = vmatprep.subr.mxu0 0.0
    %231 = vmatpush1.msra.mxu0 0.0
    %232 = vmatprep.subr.mxu0 0.0
    %233 = vmatpush1.msra.mxu0 0.0
    %234 = vmatprep.subr.mxu0 0.0
    %235 = vmatpush1.msra.mxu0 0.0
    %236 = vmatprep.subr.mxu0 0.0
    %237 = vmatpush1.msra.mxu0 0.0
    %238 = vmatprep.subr.mxu0 0.0
    %239 = vmatpush1.msra.mxu0 0.0
    %240 = vmatprep.mubr.f32.mxu0 0.0
    %241 = vmatmul.mubr.f32.gmra.mrb[0].mxu0 %v171
    %v242 = vpop.f32.mrb[0].mxu0
    %v243 = vadd.f32 %v168, %v242
    %v244 = vpop.f32.mrb[0].mxu0
    %245 = vmatprep.mubr.f32.mxu0 0.0
    %246 = vmatmul.mubr.f32.gmra.mrb[0].mxu0 %v174
    %v247 = vpop.f32.mrb[0].mxu0
    %v248 = vadd.f32 %v168, %v247
    %v249 = vpop.f32.mrb[0].mxu0
    %250 = vdwg.mxu0
    %251 = vmax.xlane.f32.xlu0 %v243
    %v252 = vpop.xlane.xlu0 %251
    %253 = vmax.xlane.f32.xlu0 %v248
    %v254 = vpop.xlane.xlu0 %253
    %v255 = vsub.f32 %v243, %v252
    %v256 = vsub.f32 %v248, %v254
    %v257 = vmul.f32 %v255, 1.442695
    %v258 = vpow.pop %v257
    %v259 = vmul.f32 %v256, 1.442695
    %v260 = vpow.pop %v259
    %261 = vadd.xlane.f32.xlu0 %v258
    %v262 = vpop.xlane.xlu0 %261
    %263 = vadd.xlane.f32.xlu0 %v260
    %v264 = vpop.xlane.xlu0 %263
    %v265 = vrcp.pop %v262
    %v266 = vrcp.pop %v264
    %v267 = vmul.f32 %v262, %v265
    %v268 = vmul.f32 %v264, %v266
    %v269 = vsub.f32 2.0, %v267
    %v270 = vsub.f32 2.0, %v268
    %v271 = vmul.f32 %v265, %v269
    %v272 = vmul.f32 %v266, %v270
    %v273 = vmul.f32 %v258, %v271
    %v274 = vmul.f32 %v260, %v272
    %275 = vst [vmem:[#allocation8] sm:$0xff] %v273
    %276 = vst [vmem:[#allocation8 + $0x8] sm:$0xff] %v274
    // Predicated region
    $region34: #{tpu_custom_call.1} parent=1 // pred_check
      _
    $region35: #{tpu_custom_call.1} parent=1 // pred_check_branch
      %278 = sbr.rel (0) target = $region37
    $region36: #{tpu_custom_call.1} parent=1 // pred_region
      %s280 = ssub.s32 256, 256
      %281 = vsyncadd [#allocation4], %s280
      %s282 = sshll.u32 [#allocation8], 4
      %s283 = int_to_ptr.vmem [resolvable:$true] %s282
      %288 = dma.vmem_to_hbm [thread:$0]  %s283, 256, %s5, [#allocation4], 128, 128, 8
    $region37: #{tpu_custom_call.1} parent=1 // pred_fallthru
      _
    // Predicated region
    $region38: #{tpu_custom_call.1} parent=1 // pred_check
      _
    $region39: #{tpu_custom_call.1} parent=1 // pred_check_branch
      %290 = sbr.rel (0) target = $region41
    $region40: #{tpu_custom_call.1} parent=1 // pred_region
      %291 = dma.done [#allocation4], 256
    $region41: #{tpu_custom_call.1} parent=1 // pred_fallthru
      _
    %292 = vsyncpa [#allocation3], 1
    %293 = vsyncpa [#allocation6], 1
    %294 = vsyncpa [#allocation4], 1

// kernel: tpu_custom_call.1
$region0: #{tpu_custom_call.1}
  #allocation0 [shape = 'u32[]', space=smem, size = 0x4, offset = 0x4, fixed_abs, tag = 'smem constant byte address 0x4 - core index']
  #allocation1 [shape = 'u32[144,128]{1,0:T(1,128)}', space=vmem, size = 0x12000, scoped, tag = 'internal scratch']
  %s0 = inlined_call_operand.hbm [shape: f32[16,32], index: 0, kind: input, shape index: {}]
  %s1 = inlined_call_operand.hbm [shape: f32[32,32], index: 1, kind: input, shape index: {}]
  %s2 = inlined_call_operand.vmem [shape: f32[1,32], index: 2, kind: input, shape index: {}]
  %s3 = inlined_call_operand.hbm [shape: f32[32,128], index: 3, kind: input, shape index: {}]
  %s4 = inlined_call_operand.vmem [shape: f32[1,128], index: 4, kind: input, shape index: {}]
  %s5 = inlined_call_operand.hbm [shape: f32[16,128], index: 5, kind: output, shape index: {}]
  %s6 = sld [smem:[#allocation0]]
  $region42: #{tpu_custom_call.1} parent=0
    _
  %s8 = ssub.s32 1, %s6
  %s9 = scalar_select 0, %s8, %s6
  $region1: #{tpu_custom_call.1} parent=0
    #allocation2 [shape = 'u8[8192]{0}', space=vmem, size = 0x2000, scoped, tag = 'input window, operand 0, single buffered']
    #allocation3 [shape = 's32[1]{0}', space=sflag, size = 0x4, scoped, tag = 'scoped memory for tpu_custom_call.1']
    #allocation4 [shape = 's32[1]{0}', space=sflag, size = 0x4, scoped, tag = 'scoped memory for tpu_custom_call.1']
    #allocation5 [shape = 'u8[16384]{0}', space=vmem, size = 0x4000, scoped, tag = 'input window, operand 1, single buffered']
    #allocation6 [shape = 's32[1]{0}', space=sflag, size = 0x4, scoped, tag = 'scoped memory for tpu_custom_call.1']
    #allocation7 [shape = 'u8[16384]{0}', space=vmem, size = 0x4000, scoped, tag = 'input window, operand 3, single buffered']
    #allocation8 [shape = 'u8[8192]{0}', space=vmem, size = 0x2000, scoped, tag = 'output window, operand 0, single buffered']
    %10 = vsyncpa [#allocation3], 0
    %11 = vsyncpa [#allocation6], 0
    %12 = vsyncpa [#allocation4], 0
    // Predicated region
    $region2: #{tpu_custom_call.1} parent=1 // pred_check
      _
    $region3: #{tpu_custom_call.1} parent=1 // pred_check_branch
      %14 = sbr.rel (0) target = $region5
    $region4: #{tpu_custom_call.1} parent=1 // pred_region
      %s16 = ssub.s32 256, 256
      %17 = vsyncadd [#allocation3], %s16
      %s18 = sshll.u32 [#allocation2], 4
      %s19 = int_to_ptr.vmem [resolvable:$true] %s18
      %24 = dma.hbm_to_vmem [thread:$0]  %s0, 256, %s19, [#allocation3], 128, 128, 8
    $region5: #{tpu_custom_call.1} parent=1 // pred_fallthru
      _
    // Predicated region
    $region6: #{tpu_custom_call.1} parent=1 // pred_check
      _
    $region7: #{tpu_custom_call.1} parent=1 // pred_check_branch
      %26 = sbr.rel (0) target = $region9
    $region8: #{tpu_custom_call.1} parent=1 // pred_region
      %s28 = ssub.s32 512, 512
      %29 = vsyncadd [#allocation6], %s28
      %s30 = sshll.u32 [#allocation5], 4
      %s31 = int_to_ptr.vmem [resolvable:$true] %s30
      %36 = dma.hbm_to_vmem [thread:$0]  %s1, 512, %s31, [#allocation6], 128, 128, 8
    $region9: #{tpu_custom_call.1} parent=1 // pred_fallthru
      _
    // Predicated region
    $region10: #{tpu_custom_call.1} parent=1 // pred_check
      _
    $region11: #{tpu_custom_call.1} parent=1 // pred_check_branch
      %38 = sbr.rel (0) target = $region13
    $region12: #{tpu_custom_call.1} parent=1 // pred_region
      _
    $region13: #{tpu_custom_call.1} parent=1 // pred_fallthru
      _
    // Predicated region
    $region14: #{tpu_custom_call.1} parent=1 // pred_check
      _
    $region15: #{tpu_custom_call.1} parent=1 // pred_check_branch
      %40 = sbr.rel (0) target = $region17
    $region16: #{tpu_custom_call.1} parent=1 // pred_region
      %s42 = ssub.s32 512, 512
      %43 = vsyncadd [#allocation6], %s42
      %s44 = sshll.u32 [#allocation7], 4
      %s45 = int_to_ptr.vmem [resolvable:$true] %s44
      %50 = dma.hbm_to_vmem [thread:$0]  %s3, 512, %s45, [#allocation6], 128, 128, 8
    $region17: #{tpu_custom_call.1} parent=1 // pred_fallthru
      _
    // Predicated region
    $region18: #{tpu_custom_call.1} parent=1 // pred_check
      _
    $region19: #{tpu_custom_call.1} parent=1 // pred_check_branch
      %52 = sbr.rel (0) target = $region21
    $region20: #{tpu_custom_call.1} parent=1 // pred_region
      _
    $region21: #{tpu_custom_call.1} parent=1 // pred_fallthru
      _
    // Predicated region
    $region22: #{tpu_custom_call.1} parent=1 // pred_check
      _
    $region23: #{tpu_custom_call.1} parent=1 // pred_check_branch
      %54 = sbr.rel (0) target = $region25
    $region24: #{tpu_custom_call.1} parent=1 // pred_region
      %55 = dma.done [#allocation3], 256
    $region25: #{tpu_custom_call.1} parent=1 // pred_fallthru
      _
    // Predicated region
    $region26: #{tpu_custom_call.1} parent=1 // pred_check
      _
    $region27: #{tpu_custom_call.1} parent=1 // pred_check_branch
      %57 = sbr.rel (0) target = $region29
    $region28: #{tpu_custom_call.1} parent=1 // pred_region
      %58 = dma.done [#allocation6], 512
    $region29: #{tpu_custom_call.1} parent=1 // pred_fallthru
      _
    // Predicated region
    $region30: #{tpu_custom_call.1} parent=1 // pred_check
      _
    $region31: #{tpu_custom_call.1} parent=1 // pred_check_branch
      %60 = sbr.rel (0) target = $region33
    $region32: #{tpu_custom_call.1} parent=1 // pred_region
      %61 = dma.done [#allocation6], 512
    $region33: #{tpu_custom_call.1} parent=1 // pred_fallthru
      _
    %v62 = vld [vmem:[#allocation5] sm:$0xff]
    %v63 = vld [vmem:[#allocation5 + $0x8] sm:$0xff]
    %v64 = vld [vmem:[#allocation5 + $0x10] sm:$0xff]
    %v65 = vld [vmem:[#allocation5 + $0x18] sm:$0xff]
    %v66 = vld [vmem:[#allocation7] sm:$0xff]
    %v67 = vld [vmem:[#allocation7 + $0x8] sm:$0xff]
    %v68 = vld [vmem:[#allocation7 + $0x10] sm:$0xff]
    %v69 = vld [vmem:[#allocation7 + $0x18] sm:$0xff]
    %v70 = vld [vmem:[#allocation2] sm:$0xff]
    %v71 = vld [vmem:[#allocation2 + $0x8] sm:$0xff]
    %v72 = vld [vmem:[%s2] sm:$0x1]
    %v74 = vlaneseq
    %v75 = vshrl.u32 %v74, 7
    %v76 = vsub.s32 0, %v75
    %v77 = vrot.slane %v72, %v76
    %vm79 = vcmask 261120
    %v81 = vsel %vm79, %v70, 0
    %v84 = vsel %vm79, %v71, 0
    %86 = vmatprep.subr.mxu0 0.0
    %87 = vmatpush1.msra.mxu0 %v62
    %88 = vmatprep.subr.mxu0 0.0
    %89 = vmatpush1.msra.mxu0 %v63
    %90 = vmatprep.subr.mxu0 0.0
    %91 = vmatpush1.msra.mxu0 %v64
    %92 = vmatprep.subr.mxu0 0.0
    %93 = vmatpush1.msra.mxu0 %v65
    %94 = vmatprep.subr.mxu0 0.0
    %95 = vmatpush1.msra.mxu0 0.0
    %96 = vmatprep.subr.mxu0 0.0
    %97 = vmatpush1.msra.mxu0 0.0
    %98 = vmatprep.subr.mxu0 0.0
    %99 = vmatpush1.msra.mxu0 0.0
    %100 = vmatprep.subr.mxu0 0.0
    %101 = vmatpush1.msra.mxu0 0.0
    %102 = vmatprep.subr.mxu0 0.0
    %103 = vmatpush1.msra.mxu0 0.0
    %104 = vmatprep.subr.mxu0 0.0
    %105 = vmatpush1.msra.mxu0 0.0
    %106 = vmatprep.subr.mxu0 0.0
    %107 = vmatpush1.msra.mxu0 0.0
    %108 = vmatprep.subr.mxu0 0.0
    %109 = vmatpush1.msra.mxu0 0.0
    %110 = vmatprep.subr.mxu0 0.0
    %111 = vmatpush1.msra.mxu0 0.0
    %112 = vmatprep.subr.mxu0 0.0
    %113 = vmatpush1.msra.mxu0 0.0
    %114 = vmatprep.subr.mxu0 0.0
    %115 = vmatpush1.msra.mxu0 0.0
    %116 = vmatprep.subr.mxu0 0.0
    %117 = vmatpush1.msra.mxu0 0.0
    %118 = vmatprep.subr.mxu0 0.0
    %119 = vmatpush1.msra.mxu0 0.0
    %120 = vmatprep.subr.mxu0 0.0
    %121 = vmatpush1.msra.mxu0 0.0
    %122 = vmatprep.subr.mxu0 0.0
    %123 = vmatpush1.msra.mxu0 0.0
    %124 = vmatprep.subr.mxu0 0.0
    %125 = vmatpush1.msra.mxu0 0.0
    %126 = vmatprep.subr.mxu0 0.0
    %127 = vmatpush1.msra.mxu0 0.0
    %128 = vmatprep.subr.mxu0 0.0
    %129 = vmatpush1.msra.mxu0 0.0
    %130 = vmatprep.subr.mxu0 0.0
    %131 = vmatpush1.msra.mxu0 0.0
    %132 = vmatprep.subr.mxu0 0.0
    %133 = vmatpush1.msra.mxu0 0.0
    %134 = vmatprep.subr.mxu0 0.0
    %135 = vmatpush1.msra.mxu0 0.0
    %136 = vmatprep.subr.mxu0 0.0
    %137 = vmatpush1.msra.mxu0 0.0
    %138 = vmatprep.subr.mxu0 0.0
    %139 = vmatpush1.msra.mxu0 0.0
    %140 = vmatprep.subr.mxu0 0.0
    %141 = vmatpush1.msra.mxu0 0.0
    %142 = vmatprep.subr.mxu0 0.0
    %143 = vmatpush1.msra.mxu0 0.0
    %144 = vmatprep.subr.mxu0 0.0
    %145 = vmatpush1.msra.mxu0 0.0
    %146 = vmatprep.subr.mxu0 0.0
    %147 = vmatpush1.msra.mxu0 0.0
    %148 = vmatprep.subr.mxu0 0.0
    %149 = vmatpush1.msra.mxu0 0.0
    %150 = vmatprep.mubr.f32.mxu0 0.0
    %151 = vmatmul.mubr.f32.gmra.mrb[0].mxu0 %v81
    %v152 = vpop.f32.mrb[0].mxu0
    %v153 = vadd.f32 %v77, %v152
    %v154 = vpop.f32.mrb[0].mxu0
    %155 = vmatprep.mubr.f32.mxu0 0.0
    %156 = vmatmul.mubr.f32.gmra.mrb[0].mxu0 %v84
    %v157 = vpop.f32.mrb[0].mxu0
    %v158 = vadd.f32 %v77, %v157
    %v159 = vpop.f32.mrb[0].mxu0
    %160 = vdwg.mxu0
    %v161 = vtanh.pop %v153
    %v162 = vtanh.pop %v158
    %v163 = vld [vmem:[%s4] sm:$0x1]
    %v165 = vlaneseq
    %v166 = vshrl.u32 %v165, 7
    %v167 = vsub.s32 0, %v166
    %v168 = vrot.slane %v163, %v167
    %v171 = vsel %vm79, %v161, 0
    %v174 = vsel %vm79, %v162, 0
    %176 = vmatprep.subr.mxu0 0.0
    %177 = vmatpush1.msra.mxu0 %v66
    %178 = vmatprep.subr.mxu0 0.0
    %179 = vmatpush1.msra.mxu0 %v67
    %180 = vmatprep.subr.mxu0 0.0
    %181 = vmatpush1.msra.mxu0 %v68
    %182 = vmatprep.subr.mxu0 0.0
    %183 = vmatpush1.msra.mxu0 %v69
    %184 = vmatprep.subr.mxu0 0.0
    %185 = vmatpush1.msra.mxu0 0.0
    %186 = vmatprep.subr.mxu0 0.0
    %187 = vmatpush1.msra.mxu0 0.0
    %188 = vmatprep.subr.mxu0 0.0
    %189 = vmatpush1.msra.mxu0 0.0
    %190 = vmatprep.subr.mxu0 0.0
    %191 = vmatpush1.msra.mxu0 0.0
    %192 = vmatprep.subr.mxu0 0.0
    %193 = vmatpush1.msra.mxu0 0.0
    %194 = vmatprep.subr.mxu0 0.0
    %195 = vmatpush1.msra.mxu0 0.0
    %196 = vmatprep.subr.mxu0 0.0
    %197 = vmatpush1.msra.mxu0 0.0
    %198 = vmatprep.subr.mxu0 0.0
    %199 = vmatpush1.msra.mxu0 0.0
    %200 = vmatprep.subr.mxu0 0.0
    %201 = vmatpush1.msra.mxu0 0.0
    %202 = vmatprep.subr.mxu0 0.0
    %203 = vmatpush1.msra.mxu0 0.0
    %204 = vmatprep.subr.mxu0 0.0
    %205 = vmatpush1.msra.mxu0 0.0
    %206 = vmatprep.subr.mxu0 0.0
    %207 = vmatpush1.msra.mxu0 0.0
    %208 = vmatprep.subr.mxu0 0.0
    %209 = vmatpush1.msra.mxu0 0.0
    %210 = vmatprep.subr.mxu0 0.0
    %211 = vmatpush1.msra.mxu0 0.0
    %212 = vmatprep.subr.mxu0 0.0
    %213 = vmatpush1.msra.mxu0 0.0
    %214 = vmatprep.subr.mxu0 0.0
    %215 = vmatpush1.msra.mxu0 0.0
    %216 = vmatprep.subr.mxu0 0.0
    %217 = vmatpush1.msra.mxu0 0.0
    %218 = vmatprep.subr.mxu0 0.0
    %219 = vmatpush1.msra.mxu0 0.0
    %220 = vmatprep.subr.mxu0 0.0
    %221 = vmatpush1.msra.mxu0 0.0
    %222 = vmatprep.subr.mxu0 0.0
    %223 = vmatpush1.msra.mxu0 0.0
    %224 = vmatprep.subr.mxu0 0.0
    %225 = vmatpush1.msra.mxu0 0.0
    %226 = vmatprep.subr.mxu0 0.0
    %227 = vmatpush1.msra.mxu0 0.0
    %228 = vmatprep.subr.mxu0 0.0
    %229 = vmatpush1.msra.mxu0 0.0
    %230 = vmatprep.subr.mxu0 0.0
    %231 = vmatpush1.msra.mxu0 0.0
    %232 = vmatprep.subr.mxu0 0.0
    %233 = vmatpush1.msra.mxu0 0.0
    %234 = vmatprep.subr.mxu0 0.0
    %235 = vmatpush1.msra.mxu0 0.0
    %236 = vmatprep.subr.mxu0 0.0
    %237 = vmatpush1.msra.mxu0 0.0
    %238 = vmatprep.subr.mxu0 0.0
    %239 = vmatpush1.msra.mxu0 0.0
    %240 = vmatprep.mubr.f32.mxu0 0.0
    %241 = vmatmul.mubr.f32.gmra.mrb[0].mxu0 %v171
    %v242 = vpop.f32.mrb[0].mxu0
    %v243 = vadd.f32 %v168, %v242
    %v244 = vpop.f32.mrb[0].mxu0
    %245 = vmatprep.mubr.f32.mxu0 0.0
    %246 = vmatmul.mubr.f32.gmra.mrb[0].mxu0 %v174
    %v247 = vpop.f32.mrb[0].mxu0
    %v248 = vadd.f32 %v168, %v247
    %v249 = vpop.f32.mrb[0].mxu0
    %250 = vdwg.mxu0
    %251 = vmax.xlane.f32.xlu0 %v243
    %v252 = vpop.xlane.xlu0 %251
    %253 = vmax.xlane.f32.xlu0 %v248
    %v254 = vpop.xlane.xlu0 %253
    %v255 = vsub.f32 %v243, %v252
    %v256 = vsub.f32 %v248, %v254
    %v257 = vmul.f32 %v255, 1.442695
    %v258 = vpow.pop %v257
    %v259 = vmul.f32 %v256, 1.442695
    %v260 = vpow.pop %v259
    %261 = vadd.xlane.f32.xlu0 %v258
    %v262 = vpop.xlane.xlu0 %261
    %263 = vadd.xlane.f32.xlu0 %v260
    %v264 = vpop.xlane.xlu0 %263
    %v265 = vrcp.pop %v262
    %v266 = vrcp.pop %v264
    %v267 = vmul.f32 %v262, %v265
    %v268 = vmul.f32 %v264, %v266
    %v269 = vsub.f32 2.0, %v267
    %v270 = vsub.f32 2.0, %v268
    %v271 = vmul.f32 %v265, %v269
    %v272 = vmul.f32 %v266, %v270
    %v273 = vmul.f32 %v258, %v271
    %v274 = vmul.f32 %v260, %v272
    %275 = vst [vmem:[#allocation8] sm:$0xff] %v273
    %276 = vst [vmem:[#allocation8 + $0x8] sm:$0xff] %v274
    // Predicated region
    $region34: #{tpu_custom_call.1} parent=1 // pred_check
      _
    $region35: #{tpu_custom_call.1} parent=1 // pred_check_branch
      %278 = sbr.rel (0) target = $region37
    $region36: #{tpu_custom_call.1} parent=1 // pred_region
      %s280 = ssub.s32 256, 256
      %281 = vsyncadd [#allocation4], %s280
      %s282 = sshll.u32 [#allocation8], 4
      %s283 = int_to_ptr.vmem [resolvable:$true] %s282
      %288 = dma.vmem_to_hbm [thread:$0]  %s283, 256, %s5, [#allocation4], 128, 128, 8
    $region37: #{tpu_custom_call.1} parent=1 // pred_fallthru
      _
    // Predicated region
    $region38: #{tpu_custom_call.1} parent=1 // pred_check
      _
    $region39: #{tpu_custom_call.1} parent=1 // pred_check_branch
      %290 = sbr.rel (0) target = $region41
    $region40: #{tpu_custom_call.1} parent=1 // pred_region
      %291 = dma.done [#allocation4], 256
    $region41: #{tpu_custom_call.1} parent=1 // pred_fallthru
      _
    %292 = vsyncpa [#allocation3], 1
    %293 = vsyncpa [#allocation6], 1
    %294 = vsyncpa [#allocation4], 1

</llo_original>
